<compile_context>
chip_gen: v6e
topology: v6e:2x2x1
jax: 0.10.0
libtpu: 0.0.40
codegen_flags: <defaults>
</compile_context>

<pallas_src>
import jax
import jax.numpy as jnp
from jax.experimental import pallas as pl
from jax.experimental.pallas import tpu as pltpu

NBINS = 65                 # vbins = arange(65) - 32
VMEM_FRACTION = 0.75       # scoped-VMEM limit as fraction of physical VMEM
STREAM_FRACTION = 0.80     # fraction of the scoped limit handed to streamed blocks


def _vmem_limit_bytes():
    """~96 MiB on v5e/v6e (128 MiB physical), ~48 MiB on v7x (64 MiB physical).
    Falls back to the v7x-safe value if the query is unavailable."""
    try:
        phys = pltpu.get_tpu_info().vmem_capacity_bytes
    except Exception:
        phys = 64 * 1024 * 1024
    return int(phys * VMEM_FRACTION)


def _choose_tile(n, unit_bytes, fixed_bytes, budget, align=8, max_tile=None):
    """Largest divisor of n whose double-buffered streamed footprint
    (fixed_bytes + tile * unit_bytes) fits `budget`.  Prefers `align`-multiple
    tiles (sublane alignment); never exceeds the cap (no full-extent fallback)."""
    cap = max(1, (budget - fixed_bytes) // max(1, unit_bytes))
    if max_tile is not None:
        cap = min(cap, max_tile)
    cap = min(cap, n)
    best_any, best_aligned = 1, None
    for t in range(1, cap + 1):
        if n % t == 0:
            best_any = t
            if t % align == 0 or t == n:
                best_aligned = t
    if best_aligned is not None:
        return best_aligned
    # No aligned divisor fits the cap: take the smallest aligned divisor (tiny,
    # still inside the real VMEM headroom) to keep the (8,128) block layout happy.
    for t in range(align, n + 1, align):
        if n % t == 0:
            return t
    return best_any


# ----------------------------- Pallas kernels ------------------------------ #

def _proj_kernel(tf_ref, w_ref, bias_ref, a_ref, b_ref, m2_ref):
    """One fused (Cf x (2*Cp+Cm)) matmul per batch, sliced into a / b / m2.
    bpos is pre-folded into the `a` bias columns by the wrapper."""
    Cp = a_ref.shape[-1]
    tf = tf_ref[0]                                                    # (S, Cf)
    y = jnp.dot(tf, w_ref[...], preferred_element_type=jnp.float32) + bias_ref[...]
    a_ref[0] = y[:, :Cp].astype(a_ref.dtype)
    b_ref[0] = y[:, Cp:2 * Cp].astype(b_ref.dtype)
    m2_ref[0] = y[:, 2 * Cp:].astype(m2_ref.dtype)


def _pair_kernel(a_ref, b_ref, mask_ref, wcs_ref, z_ref):
    """z tile over i: z[i,j] = a[j] + b[i] + (mask[i,j] ? colsum(wpos) : 0).
    bpos is already folded into `a`; mask is int8 (select, no f32 mul temp)."""
    a = a_ref[0]                                                      # (S,  Cp)
    bt = b_ref[0]                                                     # (Ti, Cp)
    sel = mask_ref[0] != 0                                            # (Ti, S) bool
    rel = jnp.where(sel[:, :, None], wcs_ref[...][None, :, :], 0.0)   # (Ti, S, Cp)
    z_ref[0] = (a[None, :, :] + bt[:, None, :] + rel).astype(z_ref.dtype)


def _msa_kernel(mf_ref, m2_ref, wm1_ref, bm1_ref, m_ref):
    """m tile over T MSA rows: m = to_m1(msa_feat) + m2 (m2 precomputed per batch).
    NOTE: the (T,S,Cf)->(T*S,Cf) merge is a pure layout merge only when S % 8 == 0
    (true for production AlphaFold configs); otherwise it costs one VMEM copy/tile."""
    _, T, S, Cf = mf_ref.shape
    Cm = m_ref.shape[-1]
    mf = mf_ref[0].reshape(T * S, Cf)                                 # one big MXU matmul
    m1 = jnp.dot(mf, wm1_ref[...], preferred_element_type=jnp.float32) + bm1_ref[...]
    m_ref[0] = (m1.reshape(T, S, Cm) + m2_ref[...]).astype(m_ref.dtype)


# ------------------------------- Wrapper ----------------------------------- #

def input_embedder_forward(target_feat, residue_index, msa_feat, params,
                           out_dtype=jnp.float32):
    B, S, Cf = target_feat.shape
    N = msa_feat.shape[1]
    Cp = params["wa"].shape[1]
    Cm = params["wm1"].shape[1]
    f32 = jnp.float32
    dz = jnp.dtype(out_dtype).itemsize

    vmem_limit = _vmem_limit_bytes()
    stream_budget = int(vmem_limit * STREAM_FRACTION)

    # ---- relpos glue (faithful to the reference's `p[index] = 1` row-assignment).
    # Exact nearest-bin index: bins are the consecutive ints arange(65)-32, so
    # argmin(|d - vbins|) == clip(d + 32, 0, 64) with no ties possible.
    d = residue_index[:, None, :] - residue_index[:, :, None]        # d[b,i,j] = ri[j]-ri[i]
    index = jnp.clip(d + 32, 0, NBINS - 1)                           # (B, S, S) int32
    rows = B * S * S
    row_set = jnp.zeros((rows,), dtype=jnp.bool_).at[index.reshape(-1)].set(True)
    mask = row_set.reshape(B, S, S).astype(jnp.int8)                 # 1 byte/elem

    # colsum(wpos): an all-ones one-hot row dotted with wpos.
    wpos_colsum = jnp.sum(params["wpos"], axis=0, keepdims=True)     # (1, Cp)

    # Fused projection weight/bias (bpos folded into the `a` bias block).
    w_proj = jnp.concatenate([params["wa"], params["wb"], params["wm2"]], axis=1)
    b_proj = jnp.concatenate([params["ba"] + params["bpos"], params["bb"],
                              params["bm2"]], axis=1)
    Ct = 2 * Cp + Cm

    # ---- kernel 1: fused per-batch projections a, b, m2 (one matmul per batch) ----
    a, b, m2 = pl.pallas_call(
        _proj_kernel,
        out_shape=(jax.ShapeDtypeStruct((B, S, Cp), f32),
                   jax.ShapeDtypeStruct((B, S, Cp), f32),
                   jax.ShapeDtypeStruct((B, S, Cm), f32)),
        grid=(B,),
        in_specs=[
            pl.BlockSpec((1, S, Cf), lambda bi: (bi, 0, 0)),
            pl.BlockSpec((Cf, Ct), lambda bi: (0, 0)),
            pl.BlockSpec((1, Ct), lambda bi: (0, 0)),
        ],
        out_specs=(pl.BlockSpec((1, S, Cp), lambda bi: (bi, 0, 0)),
                   pl.BlockSpec((1, S, Cp), lambda bi: (bi, 0, 0)),
                   pl.BlockSpec((1, S, Cm), lambda bi: (bi, 0, 0))),
        compiler_params=pltpu.CompilerParams(
            dimension_semantics=("parallel",),
            vmem_limit_bytes=vmem_limit),
    )(target_feat, w_proj, b_proj)

    # ---- kernel 2: pair embedding, tiled over the i axis ----
    # Double-buffer-aware footprint: 2x(b + mask + z) per i-row, 2x(a + wcs) fixed.
    pair_unit = 2 * (Cp * 4 + S * 1 + S * Cp * dz)
    pair_fixed = 2 * (S * Cp * 4 + Cp * 4)
    max_ti = (S // 2) if (B == 1 and S % 2 == 0) else None   # >=2 parallel steps for v7x's 2 TCs
    ti = _choose_tile(S, pair_unit, pair_fixed, stream_budget, align=8, max_tile=max_ti)

    z = pl.pallas_call(
        _pair_kernel,
        out_shape=jax.ShapeDtypeStruct((B, S, S, Cp), out_dtype),
        grid=(B, S // ti),
        in_specs=[
            pl.BlockSpec((1, S, Cp), lambda bi, it: (bi, 0, 0)),     # a (+bpos), whole row
            pl.BlockSpec((1, ti, Cp), lambda bi, it: (bi, it, 0)),   # b (i-tile)
            pl.BlockSpec((1, ti, S), lambda bi, it: (bi, it, 0)),    # relpos mask (int8)
            pl.BlockSpec((1, Cp), lambda bi, it: (0, 0)),            # colsum(wpos)
        ],
        out_specs=pl.BlockSpec((1, ti, S, Cp), lambda bi, it: (bi, it, 0, 0)),
        compiler_params=pltpu.CompilerParams(
            dimension_semantics=("parallel", "parallel"),
            vmem_limit_bytes=vmem_limit),
    )(a, b, mask, wpos_colsum)

    # ---- kernel 3: MSA embedding, T MSA rows per grid step ----
    msa_unit = 2 * S * (Cf * 4 + Cm * dz)
    msa_fixed = 2 * (S * Cm * 4 + Cf * Cm * 4 + Cm * 4)
    max_t = (N // 2) if (B == 1 and N % 2 == 0) else None
    t = _choose_tile(N, msa_unit, msa_fixed, stream_budget, align=1, max_tile=max_t)

    m = pl.pallas_call(
        _msa_kernel,
        out_shape=jax.ShapeDtypeStruct((B, N, S, Cm), out_dtype),
        grid=(B, N // t),
        in_specs=[
            pl.BlockSpec((1, t, S, Cf), lambda bi, nt: (bi, nt, 0, 0)),
            pl.BlockSpec((1, S, Cm), lambda bi, nt: (bi, 0, 0)),     # m2, broadcast over n
            pl.BlockSpec((Cf, Cm), lambda bi, nt: (0, 0)),
            pl.BlockSpec((1, Cm), lambda bi, nt: (0, 0)),
        ],
        out_specs=pl.BlockSpec((1, t, S, Cm), lambda bi, nt: (bi, nt, 0, 0)),
        compiler_params=pltpu.CompilerParams(
            dimension_semantics=("parallel", "parallel"),
            vmem_limit_bytes=vmem_limit),
    )(msa_feat, m2, params["wm1"], params["bm1"])

    return m, z


# --------------------------- Pure-JAX reference ---------------------------- #

def reference_forward(target_feat, residue_index, msa_feat, params):
    B, S, _ = target_feat.shape
    a = target_feat @ params["wa"] + params["ba"]
    b = target_feat @ params["wb"] + params["bb"]
    z = a[:, None, :, :] + b[:, :, None, :]
    vbins = jnp.arange(NBINS, dtype=jnp.int32) - 32
    d = residue_index[:, None, :] - residue_index[:, :, None]
    index = jnp.argmin(jnp.abs(d[..., None] - vbins), axis=-1)
    rows = B * S * S
    row_set = jnp.zeros((rows,), dtype=jnp.bool_).at[index.reshape(-1)].set(True)
    p = jnp.broadcast_to(row_set[:, None], (rows, NBINS)).astype(jnp.float32)
    p = p.reshape(B, S, S, NBINS)
    z = z + p @ params["wpos"] + params["bpos"]
    m = msa_feat @ params["wm1"] + params["bm1"] \
        + (target_feat @ params["wm2"] + params["bm2"])[:, None, :, :]
    return m, z


# --------------------------- Parameter init -------------------------------- #

def init_params(key, Cf, Cm, Cp):
    ks = jax.random.split(key, 10)

    def lin(kw, kb, fin, fout):
        w = jax.random.normal(kw, (fin, fout), jnp.float32) * 0.05
        b = jax.random.normal(kb, (1, fout), jnp.float32) * 0.05
        return w, b

    wa, ba = lin(ks[0], ks[1], Cf, Cp)
    wb, bb = lin(ks[2], ks[3], Cf, Cp)
    wm1, bm1 = lin(ks[4], ks[5], Cf, Cm)
    wm2, bm2 = lin(ks[6], ks[7], Cf, Cm)
    wpos, bpos = lin(ks[8], ks[9], NBINS, Cp)
    return dict(wa=wa, ba=ba, wb=wb, bb=bb,
                wm1=wm1, bm1=bm1, wm2=wm2, bm2=bm2,
                wpos=wpos, bpos=bpos)


if __name__ == "__main__":
    B, S, N = 2, 8, 4            # batch, sequence_size, sequence_num
    Cf, Cm, Cp = 16, 32, 32      # channel_size_feat / msa / pair

    key = jax.random.PRNGKey(0)
    k1, k2, k3, kp = jax.random.split(key, 4)
    target_feat = jax.random.normal(k1, (B, S, Cf), jnp.float32)
    residue_index = jax.random.randint(k2, (B, S), 0, 50, dtype=jnp.int32)
    msa_feat = jax.random.normal(k3, (B, N, S, Cf), jnp.float32)
    params = init_params(kp, Cf, Cm, Cp)

    m, z = input_embedder_forward(target_feat, residue_index, msa_feat, params)
    jax.block_until_ready((m, z))

    m_ref, z_ref = reference_forward(target_feat, residue_index, msa_feat, params)
    assert m.shape == (B, N, S, Cm) and z.shape == (B, S, S, Cp)
    assert jnp.allclose(m, m_ref, atol=1e-5, rtol=1e-5), "msa embedding mismatch"
    assert jnp.allclose(z, z_ref, atol=1e-5, rtol=1e-5), "pair embedding mismatch"
    print("KERNEL_OK")
</pallas_src>

<mosaic_0001>
module attributes {stable_mosaic.version = 11 : i64} {
  func.func @_proj_kernel(%arg0: i32, %arg1: memref<1x8x16xf32, #tpu.memory_space<vmem>>, %arg2: memref<16x96xf32, #tpu.memory_space<vmem>>, %arg3: memref<1x96xf32, #tpu.memory_space<vmem>>, %arg4: memref<1x8x32xf32, #tpu.memory_space<vmem>>, %arg5: memref<1x8x32xf32, #tpu.memory_space<vmem>>, %arg6: memref<1x8x32xf32, #tpu.memory_space<vmem>>) attributes {dimension_semantics = [#tpu.dimension_semantics<parallel>], iteration_bounds = array<i64: 2>, scalar_prefetch = 0 : i64, scratch_operands = 0 : i64, tpu.core_type = #tpu.core_type<tc>, window_params = [{transform_indices = @transform_0, window_bounds = array<i64: 1, 8, 16>}, {pipeline_mode = #tpu.pipeline_mode<synchronous>, transform_indices = @transform_1, window_bounds = array<i64: 16, 96>}, {pipeline_mode = #tpu.pipeline_mode<synchronous>, transform_indices = @transform_2, window_bounds = array<i64: 1, 96>}, {transform_indices = @transform_3, window_bounds = array<i64: 1, 8, 32>}, {transform_indices = @transform_4, window_bounds = array<i64: 1, 8, 32>}, {transform_indices = @transform_5, window_bounds = array<i64: 1, 8, 32>}]} {
    %c0 = arith.constant 0 : index
    %c0_0 = arith.constant 0 : index
    %c0_1 = arith.constant 0 : index
    %0 = vector.load %arg1[%c0, %c0_0, %c0_1] : memref<1x8x16xf32, #tpu.memory_space<vmem>>, vector<1x8x16xf32>
    %1 = vector.shape_cast %0 : vector<1x8x16xf32> to vector<8x16xf32>
    %c0_2 = arith.constant 0 : index
    %c0_3 = arith.constant 0 : index
    %2 = vector.load %arg2[%c0_2, %c0_3] : memref<16x96xf32, #tpu.memory_space<vmem>>, vector<16x96xf32>
    %cst = arith.constant dense<0.000000e+00> : vector<8x96xf32>
    %3 = tpu.matmul %1, %2, %cst {dimension_numbers = #tpu.dot_dimension_numbers<[1], [0], [0], [1], [0, 0, 1, 1], [], []>} : vector<8x16xf32>, vector<16x96xf32>, vector<8x96xf32> -> vector<8x96xf32>
    %c0_4 = arith.constant 0 : index
    %c0_5 = arith.constant 0 : index
    %4 = vector.load %arg3[%c0_4, %c0_5] : memref<1x96xf32, #tpu.memory_space<vmem>>, vector<1x96xf32>
    %5 = vector.broadcast %4 : vector<1x96xf32> to vector<8x96xf32>
    %6 = arith.addf %3, %5 : vector<8x96xf32>
    %7 = vector.extract_strided_slice %6 {offsets = [0, 0], sizes = [8, 32], strides = [1, 1]} : vector<8x96xf32> to vector<8x32xf32>
    %c0_6 = arith.constant 0 : index
    %c0_7 = arith.constant 0 : index
    %c0_8 = arith.constant 0 : index
    %8 = vector.load %arg4[%c0_6, %c0_7, %c0_8] : memref<1x8x32xf32, #tpu.memory_space<vmem>>, vector<1x8x32xf32>
    %9 = vector.shape_cast %8 : vector<1x8x32xf32> to vector<8x32xf32>
    %10 = vector.shape_cast %7 : vector<8x32xf32> to vector<1x8x32xf32>
    tpu.vector_store %arg4[%c0_6, %c0_7, %c0_8], %10 {strides = array<i32>} : memref<1x8x32xf32, #tpu.memory_space<vmem>>, vector<1x8x32xf32>,
    %11 = vector.extract_strided_slice %6 {offsets = [0, 32], sizes = [8, 32], strides = [1, 1]} : vector<8x96xf32> to vector<8x32xf32>
    %c0_9 = arith.constant 0 : index
    %c0_10 = arith.constant 0 : index
    %c0_11 = arith.constant 0 : index
    %12 = vector.load %arg5[%c0_9, %c0_10, %c0_11] : memref<1x8x32xf32, #tpu.memory_space<vmem>>, vector<1x8x32xf32>
    %13 = vector.shape_cast %12 : vector<1x8x32xf32> to vector<8x32xf32>
    %14 = vector.shape_cast %11 : vector<8x32xf32> to vector<1x8x32xf32>
    tpu.vector_store %arg5[%c0_9, %c0_10, %c0_11], %14 {strides = array<i32>} : memref<1x8x32xf32, #tpu.memory_space<vmem>>, vector<1x8x32xf32>,
    %15 = vector.extract_strided_slice %6 {offsets = [0, 64], sizes = [8, 32], strides = [1, 1]} : vector<8x96xf32> to vector<8x32xf32>
    %c0_12 = arith.constant 0 : index
    %c0_13 = arith.constant 0 : index
    %c0_14 = arith.constant 0 : index
    %16 = vector.load %arg6[%c0_12, %c0_13, %c0_14] : memref<1x8x32xf32, #tpu.memory_space<vmem>>, vector<1x8x32xf32>
    %17 = vector.shape_cast %16 : vector<1x8x32xf32> to vector<8x32xf32>
    %18 = vector.shape_cast %15 : vector<8x32xf32> to vector<1x8x32xf32>
    tpu.vector_store %arg6[%c0_12, %c0_13, %c0_14], %18 {strides = array<i32>} : memref<1x8x32xf32, #tpu.memory_space<vmem>>, vector<1x8x32xf32>,
    return
  }
  func.func @transform_0(%arg0: i32) -> (i32, i32, i32) {
    %c0_i32 = arith.constant 0 : i32
    %c0_i32_0 = arith.constant 0 : i32
    %c0_i32_1 = arith.constant 0 : i32
    return %arg0, %c0_i32, %c0_i32_0 : i32, i32, i32
  }
  func.func @transform_1(%arg0: i32) -> (i32, i32) {
    %c0_i32 = arith.constant 0 : i32
    %c0_i32_0 = arith.constant 0 : i32
    %c0_i32_1 = arith.constant 0 : i32
    return %c0_i32, %c0_i32_0 : i32, i32
  }
  func.func @transform_2(%arg0: i32) -> (i32, i32) {
    %c0_i32 = arith.constant 0 : i32
    %c0_i32_0 = arith.constant 0 : i32
    %c0_i32_1 = arith.constant 0 : i32
    return %c0_i32, %c0_i32_0 : i32, i32
  }
  func.func @transform_3(%arg0: i32) -> (i32, i32, i32) {
    %c0_i32 = arith.constant 0 : i32
    %c0_i32_0 = arith.constant 0 : i32
    %c0_i32_1 = arith.constant 0 : i32
    return %arg0, %c0_i32, %c0_i32_0 : i32, i32, i32
  }
  func.func @transform_4(%arg0: i32) -> (i32, i32, i32) {
    %c0_i32 = arith.constant 0 : i32
    %c0_i32_0 = arith.constant 0 : i32
    %c0_i32_1 = arith.constant 0 : i32
    return %arg0, %c0_i32, %c0_i32_0 : i32, i32, i32
  }
  func.func @transform_5(%arg0: i32) -> (i32, i32, i32) {
    %c0_i32 = arith.constant 0 : i32
    %c0_i32_0 = arith.constant 0 : i32
    %c0_i32_1 = arith.constant 0 : i32
    return %arg0, %c0_i32, %c0_i32_0 : i32, i32, i32
  }
}

</mosaic_0001>

<llo_original>
// kernel: tpu_custom_call.1
$region0: #{tpu_custom_call.1}
  #allocation0 [shape = 'u32[]', space=smem, size = 0x4, offset = 0x4, fixed_abs, tag = 'smem constant byte address 0x4 - core index']
  #allocation1 [shape = 'u32[144,128]{1,0:T(1,128)}', space=vmem, size = 0x12000, scoped, tag = 'internal scratch']
  %s0 = inlined_call_operand.hbm [shape: f32[2,8,16], index: 0, kind: input, shape index: {}]
  %s1 = inlined_call_operand.hbm [shape: f32[16,96], index: 1, kind: input, shape index: {}]
  %s2 = inlined_call_operand.vmem [shape: f32[1,96], index: 2, kind: input, shape index: {}]
  %s3 = inlined_call_operand.hbm [shape: f32[2,8,32], index: 3, kind: output, shape index: {0}]
  %s4 = inlined_call_operand.hbm [shape: f32[2,8,32], index: 4, kind: output, shape index: {1}]
  %s5 = inlined_call_operand.hbm [shape: f32[2,8,32], index: 5, kind: output, shape index: {2}]
  %6 = xla_tuple %s3, %s4, %s5
  %s7 = sld [smem:[#allocation0]]
  $region69: #{tpu_custom_call.1} parent=0
    _
  %s9 = ssub.s32 1, %s7
  %s10 = scalar_select 0, %s9, %s7
  $region1: #{tpu_custom_call.1} parent=0
    #allocation2 [shape = 'u8[8192]{0}', space=vmem, size = 0x2000, scoped, tag = 'input window, operand 0']
    #allocation3 [shape = 's32[2]{0}', space=sflag, size = 0x8, scoped, tag = 'scoped memory for tpu_custom_call.1']
    #allocation4 [shape = 's32[2]{0}', space=sflag, size = 0x8, scoped, tag = 'scoped memory for tpu_custom_call.1']
    #allocation5 [shape = 'u8[8192]{0}', space=vmem, size = 0x2000, scoped, tag = 'input window, operand 1, single buffered']
    #allocation6 [shape = 's32[1]{0}', space=sflag, size = 0x4, scoped, tag = 'scoped memory for tpu_custom_call.1']
    #allocation7 [shape = 'u8[8192]{0}', space=vmem, size = 0x2000, scoped, tag = 'output window, operand 0']
    #allocation8 [shape = 'u8[8192]{0}', space=vmem, size = 0x2000, scoped, tag = 'output window, operand 1']
    #allocation9 [shape = 's32[2]{0}', space=sflag, size = 0x8, scoped, tag = 'scoped memory for tpu_custom_call.1']
    #allocation10 [shape = 'u8[8192]{0}', space=vmem, size = 0x2000, scoped, tag = 'output window, operand 2']
    %11 = vsyncpa [#allocation3], 0
    %s12 = scalar_lea.sflag [#allocation3], 1
    %13 = vsyncpa %s12, 0
    %14 = vsyncpa [#allocation6], 0
    %15 = vsyncpa [#allocation4], 0
    %s16 = scalar_lea.sflag [#allocation4], 1
    %17 = vsyncpa %s16, 0
    %18 = vsyncpa [#allocation9], 0
    %s19 = scalar_lea.sflag [#allocation9], 1
    %20 = vsyncpa %s19, 0
    loop: start=0, step=1, limit=4
    $region2: #{tpu_custom_call.1} parent=1 // loop_pre_header
      _
    $region3: #{tpu_custom_call.1} parent=1 // loop_header
      %s22 = sphi 0, %s26
      %p23 = scmp.ge.s32.totalorder %s22, 4
      %s32 = sphi 0, %s34
      %s35 = sphi 0, %s32
      %s36 = sphi 0, %s35
      %s52 = sphi 0, %s36
      %s56 = sphi 0, %s56
      %s58 = sphi 0, %s56
      %s59 = sphi 0, %s58
      %s73 = sphi 0, %s59
      %s77 = sphi 0, %s77
      %s79 = sphi 0, %s77
      %s80 = sphi 0, %s79
      %s94 = sphi 0, %s80
      %s100 = sphi 0, %s102
      %s103 = sphi 0, %s100
      %s104 = sphi 0, %s103
      %s120 = sphi 0, %s104
      %s126 = sphi 0, %s128
      %s129 = sphi 0, %s126
      %s130 = sphi 0, %s129
      %s146 = sphi 0, %s130
      %s152 = sphi 0, %s154
      %s155 = sphi 0, %s152
      %s156 = sphi 0, %s155
      %s172 = sphi 0, %s156
    $region4: #{tpu_custom_call.1} parent=1 // loop_header_branch
      %25 = sbr.rel (%p23) target = $region8
    $region5: #{tpu_custom_call.1} parent=1 // loop_body
      %s27 = ssub.s32 %s22, 1
      %s28 = ssub.s32 %s22, 2
      %s29 = sadd.s32 %s22, 1
      %s30 = ssub.s32 %s22, %s29
      %p31 = scmp.eq.s32.totalorder %s30, 0
      %s33 = sadd.s32 %s32, 1
      %s34 = scalar_select %p31, %s32, %s33
      %p37 = pneg %p31
      %p38 = scmp.eq.s32.totalorder %s22, 1
      %p39 = por %p37, %p38
      %p40 = scmp.ne.s32.totalorder %s32, %s35
      %p41 = scmp.eq.s32.totalorder %s22, 0
      %p42 = por %p40, %p41
      %p43 = scmp.ne.s32.totalorder %s32, %s35
      %p44 = scmp.eq.s32.totalorder %s27, 1
      %p45 = por %p43, %p44
      %p46 = scmp.ne.s32.totalorder %s35, %s36
      %p47 = scmp.eq.s32.totalorder %s27, 0
      %p48 = por %p46, %p47
      %p49 = scmp.ne.s32.totalorder %s35, %s36
      %p50 = scmp.eq.s32.totalorder %s28, 1
      %p51 = por %p49, %p50
      %p53 = scmp.ne.s32.totalorder %s36, %s52
      %p54 = scmp.eq.s32.totalorder %s28, 0
      %p55 = por %p53, %p54
      %s57 = sadd.s32 %s56, 1
      %p60 = scmp.eq.s32.totalorder %s22, 1
      %p61 = scmp.ne.s32.totalorder %s56, %s58
      %p62 = scmp.eq.s32.totalorder %s22, 0
      %p63 = por %p61, %p62
      %p64 = scmp.ne.s32.totalorder %s56, %s58
      %p65 = scmp.eq.s32.totalorder %s27, 1
      %p66 = por %p64, %p65
      %p67 = scmp.ne.s32.totalorder %s58, %s59
      %p68 = scmp.eq.s32.totalorder %s27, 0
      %p69 = por %p67, %p68
      %p70 = scmp.ne.s32.totalorder %s58, %s59
      %p71 = scmp.eq.s32.totalorder %s28, 1
      %p72 = por %p70, %p71
      %p74 = scmp.ne.s32.totalorder %s59, %s73
      %p75 = scmp.eq.s32.totalorder %s28, 0
      %p76 = por %p74, %p75
      %s78 = sadd.s32 %s77, 1
      %p81 = scmp.eq.s32.totalorder %s22, 1
      %p82 = scmp.ne.s32.totalorder %s77, %s79
      %p83 = scmp.eq.s32.totalorder %s22, 0
      %p84 = por %p82, %p83
      %p85 = scmp.ne.s32.totalorder %s77, %s79
      %p86 = scmp.eq.s32.totalorder %s27, 1
      %p87 = por %p85, %p86
      %p88 = scmp.ne.s32.totalorder %s79, %s80
      %p89 = scmp.eq.s32.totalorder %s27, 0
      %p90 = por %p88, %p89
      %p91 = scmp.ne.s32.totalorder %s79, %s80
      %p92 = scmp.eq.s32.totalorder %s28, 1
      %p93 = por %p91, %p92
      %p95 = scmp.ne.s32.totalorder %s80, %s94
      %p96 = scmp.eq.s32.totalorder %s28, 0
      %p97 = por %p95, %p96
      %s98 = ssub.s32 %s22, %s29
      %p99 = scmp.eq.s32.totalorder %s98, 0
      %s101 = sadd.s32 %s100, 1
      %s102 = scalar_select %p99, %s100, %s101
      %p105 = pneg %p99
      %p106 = scmp.eq.s32.totalorder %s22, 1
      %p107 = por %p105, %p106
      %p108 = scmp.ne.s32.totalorder %s100, %s103
      %p109 = scmp.eq.s32.totalorder %s22, 0
      %p110 = por %p108, %p109
      %p111 = scmp.ne.s32.totalorder %s100, %s103
      %p112 = scmp.eq.s32.totalorder %s27, 1
      %p113 = por %p111, %p112
      %p114 = scmp.ne.s32.totalorder %s103, %s104
      %p115 = scmp.eq.s32.totalorder %s27, 0
      %p116 = por %p114, %p115
      %p117 = scmp.ne.s32.totalorder %s103, %s104
      %p118 = scmp.eq.s32.totalorder %s28, 1
      %p119 = por %p117, %p118
      %p121 = scmp.ne.s32.totalorder %s104, %s120
      %p122 = scmp.eq.s32.totalorder %s28, 0
      %p123 = por %p121, %p122
      %s124 = ssub.s32 %s22, %s29
      %p125 = scmp.eq.s32.totalorder %s124, 0
      %s127 = sadd.s32 %s126, 1
      %s128 = scalar_select %p125, %s126, %s127
      %p131 = pneg %p125
      %p132 = scmp.eq.s32.totalorder %s22, 1
      %p133 = por %p131, %p132
      %p134 = scmp.ne.s32.totalorder %s126, %s129
      %p135 = scmp.eq.s32.totalorder %s22, 0
      %p136 = por %p134, %p135
      %p137 = scmp.ne.s32.totalorder %s126, %s129
      %p138 = scmp.eq.s32.totalorder %s27, 1
      %p139 = por %p137, %p138
      %p140 = scmp.ne.s32.totalorder %s129, %s130
      %p141 = scmp.eq.s32.totalorder %s27, 0
      %p142 = por %p140, %p141
      %p143 = scmp.ne.s32.totalorder %s129, %s130
      %p144 = scmp.eq.s32.totalorder %s28, 1
      %p145 = por %p143, %p144
      %p147 = scmp.ne.s32.totalorder %s130, %s146
      %p148 = scmp.eq.s32.totalorder %s28, 0
      %p149 = por %p147, %p148
      %s150 = ssub.s32 %s22, %s29
      %p151 = scmp.eq.s32.totalorder %s150, 0
      %s153 = sadd.s32 %s152, 1
      %s154 = scalar_select %p151, %s152, %s153
      %p157 = pneg %p151
      %p158 = scmp.eq.s32.totalorder %s22, 1
      %p159 = por %p157, %p158
      %p160 = scmp.ne.s32.totalorder %s152, %s155
      %p161 = scmp.eq.s32.totalorder %s22, 0
      %p162 = por %p160, %p161
      %p163 = scmp.ne.s32.totalorder %s152, %s155
      %p164 = scmp.eq.s32.totalorder %s27, 1
      %p165 = por %p163, %p164
      %p166 = scmp.ne.s32.totalorder %s155, %s156
      %p167 = scmp.eq.s32.totalorder %s27, 0
      %p168 = por %p166, %p167
      %p169 = scmp.ne.s32.totalorder %s155, %s156
      %p170 = scmp.eq.s32.totalorder %s28, 1
      %p171 = por %p169, %p170
      %p173 = scmp.ne.s32.totalorder %s156, %s172
      %p174 = scmp.eq.s32.totalorder %s28, 0
      %p175 = por %p173, %p174
      %p176 = scmp.le.s32.totalorder 1, %s22
      %p177 = scmp.lt.s32.totalorder %s22, 3
      %p178 = pnand %p176, %p177
      %p179 = pneg %p178
      // Predicated region
      $region9: #{tpu_custom_call.1} parent=5 // pred_check
        _
      $region10: #{tpu_custom_call.1} parent=5 // pred_check_branch
        %181 = sbr.rel (%p178) target = $region12
      $region11: #{tpu_custom_call.1} parent=5 // pred_region
        %s182 = ssub.s32 %s22, 1
        // Predicated region
        $region13: #{tpu_custom_call.1} parent=11 // pred_check
          %p183 = pneg %p69
        $region14: #{tpu_custom_call.1} parent=11 // pred_check_branch
          %185 = sbr.rel (%p183) target = $region16
        $region15: #{tpu_custom_call.1} parent=11 // pred_region
          %s187 = ssub.s32 256, 256
          %188 = vsyncadd [#allocation6], %s187
          %s189 = sshll.u32 [#allocation5], 4
          %s190 = int_to_ptr.vmem [resolvable:$true] %s189
          %195 = dma.hbm_to_vmem [thread:$0]  %s1, 256, %s190, [#allocation6], 128, 128, 8
        $region16: #{tpu_custom_call.1} parent=11 // pred_fallthru
          _
        // Predicated region
        $region17: #{tpu_custom_call.1} parent=11 // pred_check
          %p196 = pneg %p90
        $region18: #{tpu_custom_call.1} parent=11 // pred_check_branch
          %198 = sbr.rel (%p196) target = $region20
        $region19: #{tpu_custom_call.1} parent=11 // pred_region
          _
        $region20: #{tpu_custom_call.1} parent=11 // pred_fallthru
          _
      $region12: #{tpu_custom_call.1} parent=5 // pred_fallthru
        _
      %p199 = scmp.lt.s32.totalorder %s22, 2
      // Predicated region
      $region21: #{tpu_custom_call.1} parent=5 // pred_check
        %p200 = pneg %p199
      $region22: #{tpu_custom_call.1} parent=5 // pred_check_branch
        %202 = sbr.rel (%p200) target = $region24
      $region23: #{tpu_custom_call.1} parent=5 // pred_region
        // Predicated region
        $region25: #{tpu_custom_call.1} parent=23 // pred_check
          %p203 = pneg %p42
        $region26: #{tpu_custom_call.1} parent=23 // pred_check_branch
          %205 = sbr.rel (%p203) target = $region28
        $region27: #{tpu_custom_call.1} parent=23 // pred_region
          %s206 = sand.u32 %s32, 1
          %s207 = scalar_lea.sflag [#allocation3], %s206
          %s208 = sand.u32 %s32, 1
          %s209 = smul.addr %s208, 8
          %s210 = scalar_lea.vmem [#allocation2], %s209
          %s212 = ssub.s32 128, 128
          %213 = vsyncadd %s207, %s212
          %s214 = smul.addr %s22, 128
          %s215 = scalar_lea.hbm %s0, %s214
          %s217 = sshll.u32 %s210, 4
          %s218 = int_to_ptr.vmem [resolvable:$true] %s217
          %220 = dma.hbm_to_vmem [thread:$0]  %s215, 128, %s218, %s207
        $region28: #{tpu_custom_call.1} parent=23 // pred_fallthru
          _
      $region24: #{tpu_custom_call.1} parent=5 // pred_fallthru
        _
      %p221 = scmp.le.s32.totalorder 1, %s22
      %p222 = scmp.lt.s32.totalorder %s22, 3
      %p223 = pnand %p221, %p222
      %p224 = pneg %p223
      // Predicated region
      $region29: #{tpu_custom_call.1} parent=5 // pred_check
        _
      $region30: #{tpu_custom_call.1} parent=5 // pred_check_branch
        %226 = sbr.rel (%p223) target = $region32
      $region31: #{tpu_custom_call.1} parent=5 // pred_region
        %s227 = ssub.s32 %s22, 1
        %s228 = sand.u32 %s35, 1
        %s229 = scalar_lea.sflag [#allocation3], %s228
        %s230 = sand.u32 %s35, 1
        %s231 = smul.addr %s230, 8
        %s232 = scalar_lea.vmem [#allocation2], %s231
        // Predicated region
        $region33: #{tpu_custom_call.1} parent=31 // pred_check
          %p233 = pneg %p48
        $region34: #{tpu_custom_call.1} parent=31 // pred_check_branch
          %235 = sbr.rel (%p233) target = $region36
        $region35: #{tpu_custom_call.1} parent=31 // pred_region
          %236 = dma.done %s229, 128
        $region36: #{tpu_custom_call.1} parent=31 // pred_fallthru
          _
        // Predicated region
        $region37: #{tpu_custom_call.1} parent=31 // pred_check
          %p237 = pneg %p69
        $region38: #{tpu_custom_call.1} parent=31 // pred_check_branch
          %239 = sbr.rel (%p237) target = $region40
        $region39: #{tpu_custom_call.1} parent=31 // pred_region
          %240 = dma.done [#allocation6], 256
        $region40: #{tpu_custom_call.1} parent=31 // pred_fallthru
          _
        %s241 = sand.u32 %s35, 1
        %s242 = scalar_lea.sflag [#allocation3], %s241
        %s243 = sand.u32 %s35, 1
        %s244 = smul.addr %s243, 8
        %s245 = scalar_lea.vmem [#allocation2], %s244
        %p246 = pneg %p48
        %p247 = pneg %p45
        %p248 = pneg %p69
        %p249 = pneg %p66
        %p250 = pneg %p90
        %p251 = pneg %p87
        %p252 = pneg %p116
        %p253 = pneg %p113
        %s254 = sand.u32 %s103, 1
        %s255 = scalar_lea.sflag [#allocation4], %s254
        %s256 = sand.u32 %s103, 1
        %s257 = smul.addr %s256, 8
        %s258 = scalar_lea.vmem [#allocation7], %s257
        %p259 = pneg %p142
        %p260 = pneg %p139
        %s261 = sand.u32 %s27, 1
        %s262 = scalar_lea.sflag [#allocation9], %s261
        %s263 = sand.u32 %s129, 1
        %s264 = smul.addr %s263, 8
        %s265 = scalar_lea.vmem [#allocation8], %s264
        %p266 = pneg %p168
        %p267 = pneg %p165
        %s268 = sand.u32 %s27, 1
        %s269 = scalar_lea.sflag [#allocation9], %s268
        %s270 = sand.u32 %s155, 1
        %s271 = smul.addr %s270, 8
        %s272 = scalar_lea.vmem [#allocation10], %s271
        %v273 = vld [vmem:[%s232] sm:$0xff]
        %v274 = vld [vmem:[#allocation5] sm:$0xff]
        %v275 = vld [vmem:[#allocation5 + $0x8] sm:$0xff]
        %v276 = vld [vmem:[%s2] sm:$0x1]
        %v278 = vlaneseq
        %v279 = vshrl.u32 %v278, 7
        %v280 = vsub.s32 0, %v279
        %v281 = vrot.slane %v276, %v280
        %vm283 = vcmask 130048
        %v285 = vsel %vm283, %v273, 0
        %287 = vmatprep.subr.mxu0 0.0
        %288 = vmatpush1.msra.mxu0 0.0
        %289 = vmatprep.subr.mxu0 0.0
        %290 = vmatpush1.msra.mxu0 0.0
        %291 = vmatprep.subr.mxu0 0.0
        %292 = vmatpush1.msra.mxu0 0.0
        %293 = vmatprep.subr.mxu0 0.0
        %294 = vmatpush1.msra.mxu0 0.0
        %295 = vmatprep.subr.mxu0 0.0
        %296 = vmatpush1.msra.mxu0 0.0
        %297 = vmatprep.subr.mxu0 0.0
        %298 = vmatpush1.msra.mxu0 0.0
        %299 = vmatprep.subr.mxu0 0.0
        %300 = vmatpush1.msra.mxu0 0.0
        %301 = vmatprep.subr.mxu0 0.0
        %302 = vmatpush1.msra.mxu0 0.0
        %303 = vmatprep.subr.mxu0 0.0
        %304 = vmatpush1.msra.mxu0 0.0
        %305 = vmatprep.subr.mxu0 0.0
        %306 = vmatpush1.msra.mxu0 0.0
        %307 = vmatprep.subr.mxu0 0.0
        %308 = vmatpush1.msra.mxu0 0.0
        %309 = vmatprep.subr.mxu0 0.0
        %310 = vmatpush1.msra.mxu0 0.0
        %311 = vmatprep.subr.mxu0 0.0
        %312 = vmatpush1.msra.mxu0 0.0
        %313 = vmatprep.subr.mxu0 0.0
        %314 = vmatpush1.msra.mxu0 0.0
        %315 = vmatprep.subr.mxu0 0.0
        %316 = vmatpush1.msra.mxu0 %v275
        %317 = vmatprep.subr.mxu0 0.0
        %318 = vmatpush1.msra.mxu0 %v274
        %319 = vmatprep.subr.mxu0 0.0
        %320 = vmatpush2.msra.mxu0 0.0
        %321 = vmatprep.subr.mxu0 0.0
        %322 = vmatpush2.msra.mxu0 0.0
        %323 = vmatprep.subr.mxu0 0.0
        %324 = vmatpush2.msra.mxu0 0.0
        %325 = vmatprep.subr.mxu0 0.0
        %326 = vmatpush2.msra.mxu0 0.0
        %327 = vmatprep.subr.mxu0 0.0
        %328 = vmatpush2.msra.mxu0 0.0
        %329 = vmatprep.subr.mxu0 0.0
        %330 = vmatpush2.msra.mxu0 0.0
        %331 = vmatprep.subr.mxu0 0.0
        %332 = vmatpush2.msra.mxu0 0.0
        %333 = vmatprep.subr.mxu0 0.0
        %334 = vmatpush2.msra.mxu0 0.0
        %335 = vmatprep.subr.mxu0 0.0
        %336 = vmatpush2.msra.mxu0 0.0
        %337 = vmatprep.subr.mxu0 0.0
        %338 = vmatpush2.msra.mxu0 0.0
        %339 = vmatprep.subr.mxu0 0.0
        %340 = vmatpush2.msra.mxu0 0.0
        %341 = vmatprep.subr.mxu0 0.0
        %342 = vmatpush2.msra.mxu0 0.0
        %343 = vmatprep.subr.mxu0 0.0
        %344 = vmatpush2.msra.mxu0 0.0
        %345 = vmatprep.subr.mxu0 0.0
        %346 = vmatpush2.msra.mxu0 0.0
        %347 = vmatprep.subr.mxu0 0.0
        %348 = vmatpush2.msra.mxu0 0.0
        %349 = vmatprep.subr.mxu0 0.0
        %350 = vmatpush2.msra.mxu0 0.0
        %351 = vmatprep.mubr.f32.mxu0 0.0
        %352 = vmatmul.mubr.f32.gmra.mxu0 %v285
        %v353 = vpop.f32.mrf.mxu0
        %v354 = vadd.f32 %v281, %v353
        %v355 = vpop.f32.mrf.mxu0
        %356 = vdwg.mxu0
        %vm357 = vcmask 261120
        %358 = vst.msk [vmem:[%s258] sm:$0xff] %vm357, %v354
        %360 = vrot.lane.b32.xlu0 %v354, 96
        %v361 = vpop.permute.xlu0 %360
        %363 = vst.msk [vmem:[%s265] sm:$0xff] %vm357, %v361
        %364 = vrot.lane.b32.xlu0 %v354, 64
        %v365 = vpop.permute.xlu0 %364
        %367 = vst.msk [vmem:[%s272] sm:$0xff] %vm357, %v365
        %s368 = sand.u32 %s103, 1
        %s369 = scalar_lea.sflag [#allocation4], %s368
        %s370 = sand.u32 %s103, 1
        %s371 = smul.addr %s370, 8
        %s372 = scalar_lea.vmem [#allocation7], %s371
        %s373 = sand.u32 %s27, 1
        %s374 = scalar_lea.sflag [#allocation9], %s373
        %s375 = sand.u32 %s129, 1
        %s376 = smul.addr %s375, 8
        %s377 = scalar_lea.vmem [#allocation8], %s376
        %s378 = sand.u32 %s27, 1
        %s379 = scalar_lea.sflag [#allocation9], %s378
        %s380 = sand.u32 %s155, 1
        %s381 = smul.addr %s380, 8
        %s382 = scalar_lea.vmem [#allocation10], %s381
        // Predicated region
        $region41: #{tpu_custom_call.1} parent=31 // pred_check
          %p383 = pneg %p113
        $region42: #{tpu_custom_call.1} parent=31 // pred_check_branch
          %385 = sbr.rel (%p383) target = $region44
        $region43: #{tpu_custom_call.1} parent=31 // pred_region
          %s387 = ssub.s32 128, 128
          %388 = vsyncadd %s369, %s387
          %s389 = smul.addr %s27, 128
          %s390 = scalar_lea.hbm %s3, %s389
          %s392 = sshll.u32 %s372, 4
          %s393 = int_to_ptr.vmem [resolvable:$true] %s392
          %395 = dma.vmem_to_hbm [thread:$0]  %s393, 128, %s390, %s369
        $region44: #{tpu_custom_call.1} parent=31 // pred_fallthru
          _
        // Predicated region
        $region45: #{tpu_custom_call.1} parent=31 // pred_check
          %p396 = pneg %p139
        $region46: #{tpu_custom_call.1} parent=31 // pred_check_branch
          %398 = sbr.rel (%p396) target = $region48
        $region47: #{tpu_custom_call.1} parent=31 // pred_region
          %s400 = ssub.s32 128, 128
          %401 = vsyncadd %s374, %s400
          %s402 = smul.addr %s27, 128
          %s403 = scalar_lea.hbm %s4, %s402
          %s405 = sshll.u32 %s377, 4
          %s406 = int_to_ptr.vmem [resolvable:$true] %s405
          %408 = dma.vmem_to_hbm [thread:$0]  %s406, 128, %s403, %s374
        $region48: #{tpu_custom_call.1} parent=31 // pred_fallthru
          _
        // Predicated region
        $region49: #{tpu_custom_call.1} parent=31 // pred_check
          %p409 = pneg %p165
        $region50: #{tpu_custom_call.1} parent=31 // pred_check_branch
          %411 = sbr.rel (%p409) target = $region52
        $region51: #{tpu_custom_call.1} parent=31 // pred_region
          %s413 = ssub.s32 128, 128
          %414 = vsyncadd %s379, %s413
          %s415 = smul.addr %s27, 128
          %s416 = scalar_lea.hbm %s5, %s415
          %s418 = sshll.u32 %s382, 4
          %s419 = int_to_ptr.vmem [resolvable:$true] %s418
          %421 = dma.vmem_to_hbm [thread:$0]  %s419, 128, %s416, %s379
        $region52: #{tpu_custom_call.1} parent=31 // pred_fallthru
          _
      $region32: #{tpu_custom_call.1} parent=5 // pred_fallthru
        _
      %p422 = scmp.le.s32.totalorder 2, %s22
      // Predicated region
      $region53: #{tpu_custom_call.1} parent=5 // pred_check
        %p423 = pneg %p422
      $region54: #{tpu_custom_call.1} parent=5 // pred_check_branch
        %425 = sbr.rel (%p423) target = $region56
      $region55: #{tpu_custom_call.1} parent=5 // pred_region
        %s426 = ssub.s32 %s22, 2
        // Predicated region
        $region57: #{tpu_custom_call.1} parent=55 // pred_check
          %p427 = pneg %p119
        $region58: #{tpu_custom_call.1} parent=55 // pred_check_branch
          %429 = sbr.rel (%p427) target = $region60
        $region59: #{tpu_custom_call.1} parent=55 // pred_region
          %s430 = sand.u32 %s104, 1
          %s431 = scalar_lea.sflag [#allocation4], %s430
          %s432 = sand.u32 %s104, 1
          %s433 = smul.addr %s432, 8
          %s434 = scalar_lea.vmem [#allocation7], %s433
          %435 = dma.done %s431, 128
        $region60: #{tpu_custom_call.1} parent=55 // pred_fallthru
          _
        // Predicated region
        $region61: #{tpu_custom_call.1} parent=55 // pred_check
          %p436 = pneg %p145
        $region62: #{tpu_custom_call.1} parent=55 // pred_check_branch
          %438 = sbr.rel (%p436) target = $region64
        $region63: #{tpu_custom_call.1} parent=55 // pred_region
          %s439 = sand.u32 %s28, 1
          %s440 = scalar_lea.sflag [#allocation9], %s439
          %s441 = sand.u32 %s130, 1
          %s442 = smul.addr %s441, 8
          %s443 = scalar_lea.vmem [#allocation8], %s442
          %444 = dma.done %s440, 128
        $region64: #{tpu_custom_call.1} parent=55 // pred_fallthru
          _
        // Predicated region
        $region65: #{tpu_custom_call.1} parent=55 // pred_check
          %p445 = pneg %p171
        $region66: #{tpu_custom_call.1} parent=55 // pred_check_branch
          %447 = sbr.rel (%p445) target = $region68
        $region67: #{tpu_custom_call.1} parent=55 // pred_region
          %s448 = sand.u32 %s28, 1
          %s449 = scalar_lea.sflag [#allocation9], %s448
          %s450 = sand.u32 %s156, 1
          %s451 = smul.addr %s450, 8
          %s452 = scalar_lea.vmem [#allocation10], %s451
          %453 = dma.done %s449, 128
        $region68: #{tpu_custom_call.1} parent=55 // pred_fallthru
          _
      $region56: #{tpu_custom_call.1} parent=5 // pred_fallthru
        _
    $region6: #{tpu_custom_call.1} parent=1 // loop_footer
      %s26 = sadd.s32 1, %s22
    $region7: #{tpu_custom_call.1} parent=1 // loop_footer_branch
      %21 = sbr.rel target = $region3
    $region8: #{tpu_custom_call.1} parent=1 // loop_exit
      _
    %454 = vsyncpa [#allocation3], 1
    %s455 = scalar_lea.sflag [#allocation3], 1
    %456 = vsyncpa %s455, 1
    %457 = vsyncpa [#allocation6], 1
    %458 = vsyncpa [#allocation4], 1
    %s459 = scalar_lea.sflag [#allocation4], 1
    %460 = vsyncpa %s459, 1
    %461 = vsyncpa [#allocation9], 1
    %s462 = scalar_lea.sflag [#allocation9], 1
    %463 = vsyncpa %s462, 1

</llo_original>
